<compile_context>
chip_gen: v6e
topology: v6e:2x2x1
jax: 0.10.0
libtpu: 0.0.40
codegen_flags: <defaults>
</compile_context>

<pallas_src>
import jax
import jax.numpy as jnp
from jax.experimental import pallas as pl
from jax.experimental.pallas import tpu as pltpu


# --------------------------------------------------------------------------- #
# Kernel
# --------------------------------------------------------------------------- #
def _vae_kernel(x_ref, eps_ref,
                w1_ref, b1_ref, w2_ref, b2_ref,
                w3_ref, b3_ref, w4_ref, b4_ref,
                recon_ref, mu_ref):
    """One batch tile of the fused VAE forward.

    All refs are in the row-packed layout: `pack` consecutive batch rows occupy one
    compute row, weights are block-diagonal and biases are lane-tiled, so the math
    below is element-for-element the natural per-row VAE forward.
    """
    x = x_ref[...]

    # encode
    h1 = jnp.dot(x, w1_ref[...], preferred_element_type=jnp.float32) + b1_ref[...]
    h1 = jnp.maximum(h1, 0.0)
    mu = jnp.dot(h1.astype(w2_ref.dtype), w2_ref[...],
                 preferred_element_type=jnp.float32) + b2_ref[...]
    # linear2 is applied twice in the reference -> logsigma is bit-identical to mu;
    # it is NOT stored here (wrapper aliases it), saving one HBM output stream.

    # reparameterize: z = mu + eps * exp(0.5 * logsigma), with logsigma == mu
    z = mu + eps_ref[...].astype(jnp.float32) * jnp.exp(0.5 * mu)

    # decode
    h3 = jnp.dot(z.astype(w3_ref.dtype), w3_ref[...],
                 preferred_element_type=jnp.float32) + b3_ref[...]
    h3 = jnp.maximum(h3, 0.0)
    logits = jnp.dot(h3.astype(w4_ref.dtype), w4_ref[...],
                     preferred_element_type=jnp.float32) + b4_ref[...]

    recon_ref[...] = jax.nn.sigmoid(logits).astype(recon_ref.dtype)
    mu_ref[...] = mu.astype(mu_ref.dtype)


# --------------------------------------------------------------------------- #
# Wrapper helpers
# --------------------------------------------------------------------------- #
def _round_up(a, m):
    return -(-a // m) * m


def _padded_block_bytes(rows, cols, itemsize, sub):
    """Bytes a (rows, cols) block really occupies in VMEM under (sub, 128) tiling."""
    return _round_up(max(rows, 1), sub) * _round_up(max(cols, 1), 128) * itemsize


def _vmem_cap_bytes():
    """Physical VMEM per TensorCore; conservative fallback (v7x = 64 MiB)."""
    try:
        return int(pltpu.get_tpu_info().vmem_capacity_bytes)
    except Exception:
        return 64 * 1024 * 1024


def _block_diag(w, p):
    """kron(I_p, w): block-diagonal expansion used for lane-dense row packing."""
    return w if p == 1 else jnp.kron(jnp.eye(p, dtype=w.dtype), w)


# --------------------------------------------------------------------------- #
# Forward
# --------------------------------------------------------------------------- #
def vae_forward(x, eps, params, *, block_rows=8192, io_dtype=jnp.bfloat16,
                interpret=False):
    """Fused VAEncoder forward.  Returns (recon, mu, logsigma); logsigma aliases mu.

    x      : [B, D_in]   cell features
    eps    : [B, D_out]  standard-normal noise (the torch.randn_like draw)
    params : dict w1..w4 stored [in, out] (y = x @ W + b == torch x @ W.T + b),
             biases b1..b4 stored [1, out]
    """
    if io_dtype is not None:
        x = x.astype(io_dtype)
        eps = eps.astype(io_dtype)
        params = {k: v.astype(io_dtype) for k, v in params.items()}

    B, D_in = x.shape
    D_mid = params["w1"].shape[1]
    D_out = params["w2"].shape[1]
    dtype = x.dtype
    itemsize = jnp.dtype(dtype).itemsize
    sub = {4: 8, 2: 16, 1: 32}.get(itemsize, 8)          # sublane granule per dtype

    # --- lane-dense row packing ----------------------------------------------
    pack = 128 // D_in if (D_in <= 128 and 128 % D_in == 0) else 1
    if B % pack:                                          # rare: <= pack-1 row pad
        padr = pack - B % pack
        x = jnp.concatenate([x, jnp.zeros((padr, D_in), dtype)], axis=0)
        eps = jnp.concatenate([eps, jnp.zeros((padr, D_out), dtype)], axis=0)
    Bp = x.shape[0]
    R = Bp // pack                                        # packed compute rows
    xp = x.reshape(R, pack * D_in)                        # free row-major reshape
    ep = eps.reshape(R, pack * D_out)

    # block-diagonal weights / lane-tiled biases (tiny; pre-pack once in production)
    wp = {
        "w1": _block_diag(params["w1"], pack), "b1": jnp.tile(params["b1"], (1, pack)),
        "w2": _block_diag(params["w2"], pack), "b2": jnp.tile(params["b2"], (1, pack)),
        "w3": _block_diag(params["w3"], pack), "b3": jnp.tile(params["b3"], (1, pack)),
        "w4": _block_diag(params["w4"], pack), "b4": jnp.tile(params["b4"], (1, pack)),
    }
    weight_keys = ("w1", "b1", "w2", "b2", "w3", "b3", "w4", "b4")

    # --- batch tiling over packed rows ----------------------------------------
    TR = max(1, block_rows // pack)
    TR = _round_up(max(sub, min(TR, R)), sub)
    num_tiles = pl.cdiv(R, TR)
    R_pad = num_tiles * TR            # outputs sized to whole blocks; inputs use a
    grid = (num_tiles,)               # partial edge block (no wrapper jnp.pad).

    # --- BlockSpecs ------------------------------------------------------------
    in_specs = [pl.BlockSpec((TR, pack * D_in), lambda i: (i, 0)),     # x (streamed)
                pl.BlockSpec((TR, pack * D_out), lambda i: (i, 0))]    # eps (streamed)
    for k in weight_keys:             # weights: full blocks, constant index_map ->
        in_specs.append(pl.BlockSpec(wp[k].shape, lambda i: (0, 0)))   # VMEM-resident
    out_specs = (pl.BlockSpec((TR, pack * D_in), lambda i: (i, 0)),    # recon (packed)
                 pl.BlockSpec((TR, pack * D_out), lambda i: (i, 0)))   # mu (packed)
    out_shape = (jax.ShapeDtypeStruct((R_pad, pack * D_in), dtype),
                 jax.ShapeDtypeStruct((R_pad, pack * D_out), dtype))

    # --- VMEM budget: lane-padding aware, capped at 0.8 x physical -------------
    wbytes = sum(_padded_block_bytes(*wp[k].shape, itemsize, sub) for k in weight_keys)
    sbytes = 2 * sum(_padded_block_bytes(TR, c, itemsize, sub)     # double-buffered
                     for c in (pack * D_in, pack * D_out, pack * D_in, pack * D_out))
    fbytes = 6 * _padded_block_bytes(TR, max(128, pack * max(D_in, D_mid, D_out)), 4, 8)
    vmem_limit = int(min(0.8 * _vmem_cap_bytes(),
                         max(32 * 1024 * 1024, wbytes + sbytes + fbytes + (2 << 20))))

    recon_p, mu_p = pl.pallas_call(
        _vae_kernel,
        grid=grid,
        in_specs=in_specs,
        out_specs=out_specs,
        out_shape=out_shape,
        compiler_params=pltpu.CompilerParams(
            # independent batch tiles -> shard across both TensorCores on v7x.
            # TODO(synk): verify on v7x; fall back to CORE_PARALLEL / core split.
            dimension_semantics=("parallel",),
            vmem_limit_bytes=vmem_limit,
        ),
        interpret=interpret,
    )(xp, ep, *[wp[k] for k in weight_keys])

    recon = recon_p.reshape(R_pad * pack, D_in)[:B]
    mu = mu_p.reshape(R_pad * pack, D_out)[:B]
    logsigma = mu   # exact alias: linear2 applied twice in the reference module.
    # NOTE: if the upstream model ever gets a separate logvar head, this alias and
    # the in-kernel z = mu + eps*exp(0.5*mu) must be split back out.
    return recon, mu, logsigma


# --------------------------------------------------------------------------- #
# PyTorch-Linear-style init (weights stored as [in, out])
# --------------------------------------------------------------------------- #
def init_params(key, D_in, D_out):
    D_mid = min(int((D_in + D_out) / 2), int(2 * D_out))
    dims = [(D_in, D_mid), (D_mid, D_out), (D_out, D_mid), (D_mid, D_in)]
    params = {}
    keys = jax.random.split(key, 2 * len(dims))
    for i, (fan_in, fan_out) in enumerate(dims):
        bound = float(fan_in) ** -0.5
        params[f"w{i + 1}"] = jax.random.uniform(
            keys[2 * i], (fan_in, fan_out), minval=-bound, maxval=bound,
            dtype=jnp.float32)
        params[f"b{i + 1}"] = jax.random.uniform(
            keys[2 * i + 1], (1, fan_out), minval=-bound, maxval=bound,
            dtype=jnp.float32)
    return params, D_mid


if __name__ == "__main__":
    # scAE's vaencoder_1: D_in = CellIn_Dim = 32, D_out = Gene_pc_Dim = 8
    #   -> D_mid = min((32+8)//2, 2*8) = 16.   B = 300 cells.
    B, D_in, D_out = 300, 32, 8

    key = jax.random.PRNGKey(0)
    k_params, k_x, k_eps = jax.random.split(key, 3)
    params, D_mid = init_params(k_params, D_in, D_out)
    x = jax.random.normal(k_x, (B, D_in), dtype=jnp.float32)
    eps = jax.random.normal(k_eps, (B, D_out), dtype=jnp.float32)  # randn_like draw

    # pure-JAX reference (natural, un-packed layout)
    def ref(x, eps, p):
        h1 = jnp.maximum(x @ p["w1"] + p["b1"], 0.0)
        mu = h1 @ p["w2"] + p["b2"]
        logsigma = mu                              # linear2 applied twice
        z = mu + eps * jnp.exp(0.5 * logsigma)
        h3 = jnp.maximum(z @ p["w3"] + p["b3"], 0.0)
        return jax.nn.sigmoid(h3 @ p["w4"] + p["b4"]), mu, logsigma

    r_ref, mu_ref, ls_ref = ref(x, eps, params)

    # f32 path with a small tile -> multi-step grid + ragged (partial) last block.
    recon, mu, logsigma = vae_forward(x, eps, params, block_rows=128,
                                      io_dtype=jnp.float32)
    jax.block_until_ready((recon, mu, logsigma))
    assert recon.shape == (B, D_in) and mu.shape == (B, D_out)
    assert jnp.allclose(recon, r_ref, atol=1e-4, rtol=1e-4)
    assert jnp.allclose(mu, mu_ref, atol=1e-4, rtol=1e-4)
    assert jnp.allclose(logsigma, ls_ref, atol=1e-4, rtol=1e-4)

    # default path: bf16 HBM-facing I/O (mem-bound kernel), production tile size.
    # f32 accumulation + f32 elementwise, so a loose check vs the f32 reference.
    recon16, mu16, _ = vae_forward(x, eps, params)
    jax.block_until_ready((recon16, mu16))
    assert jnp.allclose(recon16.astype(jnp.float32), r_ref, atol=0.1, rtol=0.1)
    assert jnp.allclose(mu16.astype(jnp.float32), mu_ref, atol=0.1, rtol=0.1)

    print("KERNEL_OK")
</pallas_src>

<mosaic_0001>
module attributes {stable_mosaic.version = 11 : i64} {
  func.func @_vae_kernel(%arg0: i32, %arg1: memref<32x128xf32, #tpu.memory_space<vmem>>, %arg2: memref<32x32xf32, #tpu.memory_space<vmem>>, %arg3: memref<128x64xf32, #tpu.memory_space<vmem>>, %arg4: memref<1x64xf32, #tpu.memory_space<vmem>>, %arg5: memref<64x32xf32, #tpu.memory_space<vmem>>, %arg6: memref<1x32xf32, #tpu.memory_space<vmem>>, %arg7: memref<32x64xf32, #tpu.memory_space<vmem>>, %arg8: memref<1x64xf32, #tpu.memory_space<vmem>>, %arg9: memref<64x128xf32, #tpu.memory_space<vmem>>, %arg10: memref<1x128xf32, #tpu.memory_space<vmem>>, %arg11: memref<32x128xf32, #tpu.memory_space<vmem>>, %arg12: memref<32x32xf32, #tpu.memory_space<vmem>>) attributes {dimension_semantics = [#tpu.dimension_semantics<parallel>], iteration_bounds = array<i64: 3>, scalar_prefetch = 0 : i64, scratch_operands = 0 : i64, tpu.core_type = #tpu.core_type<tc>, window_params = [{transform_indices = @transform_0, window_bounds = array<i64: 32, 128>}, {transform_indices = @transform_1, window_bounds = array<i64: 32, 32>}, {pipeline_mode = #tpu.pipeline_mode<synchronous>, transform_indices = @transform_2, window_bounds = array<i64: 128, 64>}, {pipeline_mode = #tpu.pipeline_mode<synchronous>, transform_indices = @transform_3, window_bounds = array<i64: 1, 64>}, {pipeline_mode = #tpu.pipeline_mode<synchronous>, transform_indices = @transform_4, window_bounds = array<i64: 64, 32>}, {pipeline_mode = #tpu.pipeline_mode<synchronous>, transform_indices = @transform_5, window_bounds = array<i64: 1, 32>}, {pipeline_mode = #tpu.pipeline_mode<synchronous>, transform_indices = @transform_6, window_bounds = array<i64: 32, 64>}, {pipeline_mode = #tpu.pipeline_mode<synchronous>, transform_indices = @transform_7, window_bounds = array<i64: 1, 64>}, {pipeline_mode = #tpu.pipeline_mode<synchronous>, transform_indices = @transform_8, window_bounds = array<i64: 64, 128>}, {pipeline_mode = #tpu.pipeline_mode<synchronous>, transform_indices = @transform_9, window_bounds = array<i64: 1, 128>}, {transform_indices = @transform_10, window_bounds = array<i64: 32, 128>}, {transform_indices = @transform_11, window_bounds = array<i64: 32, 32>}]} {
    %c0 = arith.constant 0 : index
    %c0_0 = arith.constant 0 : index
    %0 = vector.load %arg1[%c0, %c0_0] : memref<32x128xf32, #tpu.memory_space<vmem>>, vector<32x128xf32>
    %c0_1 = arith.constant 0 : index
    %c0_2 = arith.constant 0 : index
    %1 = vector.load %arg3[%c0_1, %c0_2] : memref<128x64xf32, #tpu.memory_space<vmem>>, vector<128x64xf32>
    %cst = arith.constant dense<0.000000e+00> : vector<32x64xf32>
    %2 = tpu.matmul %0, %1, %cst {dimension_numbers = #tpu.dot_dimension_numbers<[1], [0], [0], [1], [0, 0, 1, 1], [], []>} : vector<32x128xf32>, vector<128x64xf32>, vector<32x64xf32> -> vector<32x64xf32>
    %c0_3 = arith.constant 0 : index
    %c0_4 = arith.constant 0 : index
    %3 = vector.load %arg4[%c0_3, %c0_4] : memref<1x64xf32, #tpu.memory_space<vmem>>, vector<1x64xf32>
    %4 = vector.broadcast %3 : vector<1x64xf32> to vector<32x64xf32>
    %5 = arith.addf %2, %4 : vector<32x64xf32>
    %cst_5 = arith.constant 0.000000e+00 : f32
    %6 = vector.broadcast %cst_5 : f32 to vector<32x64xf32>
    %7 = arith.maximumf %5, %6 : vector<32x64xf32>
    %c0_6 = arith.constant 0 : index
    %c0_7 = arith.constant 0 : index
    %8 = vector.load %arg5[%c0_6, %c0_7] : memref<64x32xf32, #tpu.memory_space<vmem>>, vector<64x32xf32>
    %cst_8 = arith.constant dense<0.000000e+00> : vector<32x32xf32>
    %9 = tpu.matmul %7, %8, %cst_8 {dimension_numbers = #tpu.dot_dimension_numbers<[1], [0], [0], [1], [0, 0, 1, 1], [], []>} : vector<32x64xf32>, vector<64x32xf32>, vector<32x32xf32> -> vector<32x32xf32>
    %c0_9 = arith.constant 0 : index
    %c0_10 = arith.constant 0 : index
    %10 = vector.load %arg6[%c0_9, %c0_10] : memref<1x32xf32, #tpu.memory_space<vmem>>, vector<1x32xf32>
    %11 = vector.broadcast %10 : vector<1x32xf32> to vector<32x32xf32>
    %12 = arith.addf %9, %11 : vector<32x32xf32>
    %c0_11 = arith.constant 0 : index
    %c0_12 = arith.constant 0 : index
    %13 = vector.load %arg2[%c0_11, %c0_12] : memref<32x32xf32, #tpu.memory_space<vmem>>, vector<32x32xf32>
    %cst_13 = arith.constant 5.000000e-01 : f32
    %14 = vector.broadcast %cst_13 : f32 to vector<32x32xf32>
    %15 = arith.mulf %14, %12 : vector<32x32xf32>
    %16 = math.exp %15 : vector<32x32xf32>
    %17 = arith.mulf %13, %16 : vector<32x32xf32>
    %18 = arith.addf %12, %17 : vector<32x32xf32>
    %c0_14 = arith.constant 0 : index
    %c0_15 = arith.constant 0 : index
    %19 = vector.load %arg7[%c0_14, %c0_15] : memref<32x64xf32, #tpu.memory_space<vmem>>, vector<32x64xf32>
    %cst_16 = arith.constant dense<0.000000e+00> : vector<32x64xf32>
    %20 = tpu.matmul %18, %19, %cst_16 {dimension_numbers = #tpu.dot_dimension_numbers<[1], [0], [0], [1], [0, 0, 1, 1], [], []>} : vector<32x32xf32>, vector<32x64xf32>, vector<32x64xf32> -> vector<32x64xf32>
    %c0_17 = arith.constant 0 : index
    %c0_18 = arith.constant 0 : index
    %21 = vector.load %arg8[%c0_17, %c0_18] : memref<1x64xf32, #tpu.memory_space<vmem>>, vector<1x64xf32>
    %22 = vector.broadcast %21 : vector<1x64xf32> to vector<32x64xf32>
    %23 = arith.addf %20, %22 : vector<32x64xf32>
    %cst_19 = arith.constant 0.000000e+00 : f32
    %24 = vector.broadcast %cst_19 : f32 to vector<32x64xf32>
    %25 = arith.maximumf %23, %24 : vector<32x64xf32>
    %c0_20 = arith.constant 0 : index
    %c0_21 = arith.constant 0 : index
    %26 = vector.load %arg9[%c0_20, %c0_21] : memref<64x128xf32, #tpu.memory_space<vmem>>, vector<64x128xf32>
    %cst_22 = arith.constant dense<0.000000e+00> : vector<32x128xf32>
    %27 = tpu.matmul %25, %26, %cst_22 {dimension_numbers = #tpu.dot_dimension_numbers<[1], [0], [0], [1], [0, 0, 1, 1], [], []>} : vector<32x64xf32>, vector<64x128xf32>, vector<32x128xf32> -> vector<32x128xf32>
    %c0_23 = arith.constant 0 : index
    %c0_24 = arith.constant 0 : index
    %28 = vector.load %arg10[%c0_23, %c0_24] : memref<1x128xf32, #tpu.memory_space<vmem>>, vector<1x128xf32>
    %29 = vector.broadcast %28 : vector<1x128xf32> to vector<32x128xf32>
    %30 = arith.addf %27, %29 : vector<32x128xf32>
    %31 = arith.negf %30 : vector<32x128xf32>
    %32 = math.exp %31 : vector<32x128xf32>
    %cst_25 = arith.constant 1.000000e+00 : f32
    %33 = vector.broadcast %cst_25 : f32 to vector<32x128xf32>
    %34 = arith.addf %33, %32 : vector<32x128xf32>
    %35 = arith.divf %33, %34 : vector<32x128xf32>
    %c0_26 = arith.constant 0 : index
    %c0_27 = arith.constant 0 : index
    %36 = vector.load %arg11[%c0_26, %c0_27] : memref<32x128xf32, #tpu.memory_space<vmem>>, vector<32x128xf32>
    tpu.vector_store %arg11[%c0_26, %c0_27], %35 {strides = array<i32>} : memref<32x128xf32, #tpu.memory_space<vmem>>, vector<32x128xf32>,
    %c0_28 = arith.constant 0 : index
    %c0_29 = arith.constant 0 : index
    %37 = vector.load %arg12[%c0_28, %c0_29] : memref<32x32xf32, #tpu.memory_space<vmem>>, vector<32x32xf32>
    tpu.vector_store %arg12[%c0_28, %c0_29], %12 {strides = array<i32>} : memref<32x32xf32, #tpu.memory_space<vmem>>, vector<32x32xf32>,
    return
  }
  func.func @transform_0(%arg0: i32) -> (i32, i32) {
    %c0_i32 = arith.constant 0 : i32
    %c0_i32_0 = arith.constant 0 : i32
    return %arg0, %c0_i32 : i32, i32
  }
  func.func @transform_1(%arg0: i32) -> (i32, i32) {
    %c0_i32 = arith.constant 0 : i32
    %c0_i32_0 = arith.constant 0 : i32
    return %arg0, %c0_i32 : i32, i32
  }
  func.func @transform_2(%arg0: i32) -> (i32, i32) {
    %c0_i32 = arith.constant 0 : i32
    %c0_i32_0 = arith.constant 0 : i32
    %c0_i32_1 = arith.constant 0 : i32
    return %c0_i32, %c0_i32_0 : i32, i32
  }
  func.func @transform_3(%arg0: i32) -> (i32, i32) {
    %c0_i32 = arith.constant 0 : i32
    %c0_i32_0 = arith.constant 0 : i32
    %c0_i32_1 = arith.constant 0 : i32
    return %c0_i32, %c0_i32_0 : i32, i32
  }
  func.func @transform_4(%arg0: i32) -> (i32, i32) {
    %c0_i32 = arith.constant 0 : i32
    %c0_i32_0 = arith.constant 0 : i32
    %c0_i32_1 = arith.constant 0 : i32
    return %c0_i32, %c0_i32_0 : i32, i32
  }
  func.func @transform_5(%arg0: i32) -> (i32, i32) {
    %c0_i32 = arith.constant 0 : i32
    %c0_i32_0 = arith.constant 0 : i32
    %c0_i32_1 = arith.constant 0 : i32
    return %c0_i32, %c0_i32_0 : i32, i32
  }
  func.func @transform_6(%arg0: i32) -> (i32, i32) {
    %c0_i32 = arith.constant 0 : i32
    %c0_i32_0 = arith.constant 0 : i32
    %c0_i32_1 = arith.constant 0 : i32
    return %c0_i32, %c0_i32_0 : i32, i32
  }
  func.func @transform_7(%arg0: i32) -> (i32, i32) {
    %c0_i32 = arith.constant 0 : i32
    %c0_i32_0 = arith.constant 0 : i32
    %c0_i32_1 = arith.constant 0 : i32
    return %c0_i32, %c0_i32_0 : i32, i32
  }
  func.func @transform_8(%arg0: i32) -> (i32, i32) {
    %c0_i32 = arith.constant 0 : i32
    %c0_i32_0 = arith.constant 0 : i32
    %c0_i32_1 = arith.constant 0 : i32
    return %c0_i32, %c0_i32_0 : i32, i32
  }
  func.func @transform_9(%arg0: i32) -> (i32, i32) {
    %c0_i32 = arith.constant 0 : i32
    %c0_i32_0 = arith.constant 0 : i32
    %c0_i32_1 = arith.constant 0 : i32
    return %c0_i32, %c0_i32_0 : i32, i32
  }
  func.func @transform_10(%arg0: i32) -> (i32, i32) {
    %c0_i32 = arith.constant 0 : i32
    %c0_i32_0 = arith.constant 0 : i32
    return %arg0, %c0_i32 : i32, i32
  }
  func.func @transform_11(%arg0: i32) -> (i32, i32) {
    %c0_i32 = arith.constant 0 : i32
    %c0_i32_0 = arith.constant 0 : i32
    return %arg0, %c0_i32 : i32, i32
  }
}

</mosaic_0001>

<llo_original>
// kernel: tpu_custom_call.1
$region0: #{tpu_custom_call.1}
  #allocation0 [shape = 'u32[]', space=smem, size = 0x4, offset = 0x4, fixed_abs, tag = 'smem constant byte address 0x4 - core index']
  #allocation1 [shape = 'u32[144,128]{1,0:T(1,128)}', space=vmem, size = 0x12000, scoped, tag = 'internal scratch']
  %s0 = inlined_call_operand.vmem [shape: f32[75,128], index: 0, kind: input, shape index: {}]
  %s1 = inlined_call_operand.vmem [shape: f32[75,32], index: 1, kind: input, shape index: {}]
  %s2 = inlined_call_operand.vmem [shape: f32[128,64], index: 2, kind: input, shape index: {}]
  %s3 = inlined_call_operand.vmem [shape: f32[1,64], index: 3, kind: input, shape index: {}]
  %s4 = inlined_call_operand.vmem [shape: f32[64,32], index: 4, kind: input, shape index: {}]
  %s5 = inlined_call_operand.vmem [shape: f32[1,32], index: 5, kind: input, shape index: {}]
  %s6 = inlined_call_operand.vmem [shape: f32[32,64], index: 6, kind: input, shape index: {}]
  %s7 = inlined_call_operand.vmem [shape: f32[1,64], index: 7, kind: input, shape index: {}]
  %s8 = inlined_call_operand.vmem [shape: f32[64,128], index: 8, kind: input, shape index: {}]
  %s9 = inlined_call_operand.vmem [shape: f32[1,128], index: 9, kind: input, shape index: {}]
  %s10 = inlined_call_operand.hbm [shape: f32[96,128], index: 10, kind: output, shape index: {0}]
  %s11 = inlined_call_operand.vmem [shape: f32[96,32], index: 11, kind: output, shape index: {1}]
  %12 = xla_tuple %s10, %s11
  %s13 = sld [smem:[#allocation0]]
  $region81: #{tpu_custom_call.1} parent=0
    _
  %s15 = ssub.s32 1, %s13
  %s16 = scalar_select 0, %s15, %s13
  $region1: #{tpu_custom_call.1} parent=0
    #allocation2 [shape = 'u8[32768]{0}', space=vmem, size = 0x8000, scoped, tag = 'output window, operand 0']
    #allocation3 [shape = 's32[2]{0}', space=sflag, size = 0x8, scoped, tag = 'scoped memory for tpu_custom_call.1']
    %17 = vsyncpa [#allocation3], 0
    %s18 = scalar_lea.sflag [#allocation3], 1
    %19 = vsyncpa %s18, 0
    loop: start=0, step=1, limit=5
    $region2: #{tpu_custom_call.1} parent=1 // loop_pre_header
      _
    $region3: #{tpu_custom_call.1} parent=1 // loop_header
      %s21 = sphi 0, %s25
      %p22 = scmp.ge.s32.totalorder %s21, 5
      %s31 = sphi 0, %s33
      %s34 = sphi 0, %s31
      %s35 = sphi 0, %s34
      %s51 = sphi 0, %s35
      %s57 = sphi 0, %s59
      %s60 = sphi 0, %s57
      %s61 = sphi 0, %s60
      %s77 = sphi 0, %s61
      %s81 = sphi 0, %s81
      %s83 = sphi 0, %s81
      %s84 = sphi 0, %s83
      %s98 = sphi 0, %s84
      %s102 = sphi 0, %s102
      %s104 = sphi 0, %s102
      %s105 = sphi 0, %s104
      %s119 = sphi 0, %s105
      %s123 = sphi 0, %s123
      %s125 = sphi 0, %s123
      %s126 = sphi 0, %s125
      %s140 = sphi 0, %s126
      %s144 = sphi 0, %s144
      %s146 = sphi 0, %s144
      %s147 = sphi 0, %s146
      %s161 = sphi 0, %s147
      %s165 = sphi 0, %s165
      %s167 = sphi 0, %s165
      %s168 = sphi 0, %s167
      %s182 = sphi 0, %s168
      %s186 = sphi 0, %s186
      %s188 = sphi 0, %s186
      %s189 = sphi 0, %s188
      %s203 = sphi 0, %s189
      %s207 = sphi 0, %s207
      %s209 = sphi 0, %s207
      %s210 = sphi 0, %s209
      %s224 = sphi 0, %s210
      %s228 = sphi 0, %s228
      %s230 = sphi 0, %s228
      %s231 = sphi 0, %s230
      %s245 = sphi 0, %s231
      %s251 = sphi 0, %s253
      %s254 = sphi 0, %s251
      %s255 = sphi 0, %s254
      %s271 = sphi 0, %s255
      %s277 = sphi 0, %s279
      %s280 = sphi 0, %s277
      %s281 = sphi 0, %s280
      %s297 = sphi 0, %s281
    $region4: #{tpu_custom_call.1} parent=1 // loop_header_branch
      %24 = sbr.rel (%p22) target = $region8
    $region5: #{tpu_custom_call.1} parent=1 // loop_body
      %s26 = ssub.s32 %s21, 1
      %s27 = ssub.s32 %s21, 2
      %s28 = sadd.s32 %s21, 1
      %s29 = ssub.s32 %s21, %s28
      %p30 = scmp.eq.s32.totalorder %s29, 0
      %s32 = sadd.s32 %s31, 1
      %s33 = scalar_select %p30, %s31, %s32
      %p36 = pneg %p30
      %p37 = scmp.eq.s32.totalorder %s21, 2
      %p38 = por %p36, %p37
      %p39 = scmp.ne.s32.totalorder %s31, %s34
      %p40 = scmp.eq.s32.totalorder %s21, 0
      %p41 = por %p39, %p40
      %p42 = scmp.ne.s32.totalorder %s31, %s34
      %p43 = scmp.eq.s32.totalorder %s26, 2
      %p44 = por %p42, %p43
      %p45 = scmp.ne.s32.totalorder %s34, %s35
      %p46 = scmp.eq.s32.totalorder %s26, 0
      %p47 = por %p45, %p46
      %p48 = scmp.ne.s32.totalorder %s34, %s35
      %p49 = scmp.eq.s32.totalorder %s27, 2
      %p50 = por %p48, %p49
      %p52 = scmp.ne.s32.totalorder %s35, %s51
      %p53 = scmp.eq.s32.totalorder %s27, 0
      %p54 = por %p52, %p53
      %s55 = ssub.s32 %s21, %s28
      %p56 = scmp.eq.s32.totalorder %s55, 0
      %s58 = sadd.s32 %s57, 1
      %s59 = scalar_select %p56, %s57, %s58
      %p62 = pneg %p56
      %p63 = scmp.eq.s32.totalorder %s21, 2
      %p64 = por %p62, %p63
      %p65 = scmp.ne.s32.totalorder %s57, %s60
      %p66 = scmp.eq.s32.totalorder %s21, 0
      %p67 = por %p65, %p66
      %p68 = scmp.ne.s32.totalorder %s57, %s60
      %p69 = scmp.eq.s32.totalorder %s26, 2
      %p70 = por %p68, %p69
      %p71 = scmp.ne.s32.totalorder %s60, %s61
      %p72 = scmp.eq.s32.totalorder %s26, 0
      %p73 = por %p71, %p72
      %p74 = scmp.ne.s32.totalorder %s60, %s61
      %p75 = scmp.eq.s32.totalorder %s27, 2
      %p76 = por %p74, %p75
      %p78 = scmp.ne.s32.totalorder %s61, %s77
      %p79 = scmp.eq.s32.totalorder %s27, 0
      %p80 = por %p78, %p79
      %s82 = sadd.s32 %s81, 1
      %p85 = scmp.eq.s32.totalorder %s21, 2
      %p86 = scmp.ne.s32.totalorder %s81, %s83
      %p87 = scmp.eq.s32.totalorder %s21, 0
      %p88 = por %p86, %p87
      %p89 = scmp.ne.s32.totalorder %s81, %s83
      %p90 = scmp.eq.s32.totalorder %s26, 2
      %p91 = por %p89, %p90
      %p92 = scmp.ne.s32.totalorder %s83, %s84
      %p93 = scmp.eq.s32.totalorder %s26, 0
      %p94 = por %p92, %p93
      %p95 = scmp.ne.s32.totalorder %s83, %s84
      %p96 = scmp.eq.s32.totalorder %s27, 2
      %p97 = por %p95, %p96
      %p99 = scmp.ne.s32.totalorder %s84, %s98
      %p100 = scmp.eq.s32.totalorder %s27, 0
      %p101 = por %p99, %p100
      %s103 = sadd.s32 %s102, 1
      %p106 = scmp.eq.s32.totalorder %s21, 2
      %p107 = scmp.ne.s32.totalorder %s102, %s104
      %p108 = scmp.eq.s32.totalorder %s21, 0
      %p109 = por %p107, %p108
      %p110 = scmp.ne.s32.totalorder %s102, %s104
      %p111 = scmp.eq.s32.totalorder %s26, 2
      %p112 = por %p110, %p111
      %p113 = scmp.ne.s32.totalorder %s104, %s105
      %p114 = scmp.eq.s32.totalorder %s26, 0
      %p115 = por %p113, %p114
      %p116 = scmp.ne.s32.totalorder %s104, %s105
      %p117 = scmp.eq.s32.totalorder %s27, 2
      %p118 = por %p116, %p117
      %p120 = scmp.ne.s32.totalorder %s105, %s119
      %p121 = scmp.eq.s32.totalorder %s27, 0
      %p122 = por %p120, %p121
      %s124 = sadd.s32 %s123, 1
      %p127 = scmp.eq.s32.totalorder %s21, 2
      %p128 = scmp.ne.s32.totalorder %s123, %s125
      %p129 = scmp.eq.s32.totalorder %s21, 0
      %p130 = por %p128, %p129
      %p131 = scmp.ne.s32.totalorder %s123, %s125
      %p132 = scmp.eq.s32.totalorder %s26, 2
      %p133 = por %p131, %p132
      %p134 = scmp.ne.s32.totalorder %s125, %s126
      %p135 = scmp.eq.s32.totalorder %s26, 0
      %p136 = por %p134, %p135
      %p137 = scmp.ne.s32.totalorder %s125, %s126
      %p138 = scmp.eq.s32.totalorder %s27, 2
      %p139 = por %p137, %p138
      %p141 = scmp.ne.s32.totalorder %s126, %s140
      %p142 = scmp.eq.s32.totalorder %s27, 0
      %p143 = por %p141, %p142
      %s145 = sadd.s32 %s144, 1
      %p148 = scmp.eq.s32.totalorder %s21, 2
      %p149 = scmp.ne.s32.totalorder %s144, %s146
      %p150 = scmp.eq.s32.totalorder %s21, 0
      %p151 = por %p149, %p150
      %p152 = scmp.ne.s32.totalorder %s144, %s146
      %p153 = scmp.eq.s32.totalorder %s26, 2
      %p154 = por %p152, %p153
      %p155 = scmp.ne.s32.totalorder %s146, %s147
      %p156 = scmp.eq.s32.totalorder %s26, 0
      %p157 = por %p155, %p156
      %p158 = scmp.ne.s32.totalorder %s146, %s147
      %p159 = scmp.eq.s32.totalorder %s27, 2
      %p160 = por %p158, %p159
      %p162 = scmp.ne.s32.totalorder %s147, %s161
      %p163 = scmp.eq.s32.totalorder %s27, 0
      %p164 = por %p162, %p163
      %s166 = sadd.s32 %s165, 1
      %p169 = scmp.eq.s32.totalorder %s21, 2
      %p170 = scmp.ne.s32.totalorder %s165, %s167
      %p171 = scmp.eq.s32.totalorder %s21, 0
      %p172 = por %p170, %p171
      %p173 = scmp.ne.s32.totalorder %s165, %s167
      %p174 = scmp.eq.s32.totalorder %s26, 2
      %p175 = por %p173, %p174
      %p176 = scmp.ne.s32.totalorder %s167, %s168
      %p177 = scmp.eq.s32.totalorder %s26, 0
      %p178 = por %p176, %p177
      %p179 = scmp.ne.s32.totalorder %s167, %s168
      %p180 = scmp.eq.s32.totalorder %s27, 2
      %p181 = por %p179, %p180
      %p183 = scmp.ne.s32.totalorder %s168, %s182
      %p184 = scmp.eq.s32.totalorder %s27, 0
      %p185 = por %p183, %p184
      %s187 = sadd.s32 %s186, 1
      %p190 = scmp.eq.s32.totalorder %s21, 2
      %p191 = scmp.ne.s32.totalorder %s186, %s188
      %p192 = scmp.eq.s32.totalorder %s21, 0
      %p193 = por %p191, %p192
      %p194 = scmp.ne.s32.totalorder %s186, %s188
      %p195 = scmp.eq.s32.totalorder %s26, 2
      %p196 = por %p194, %p195
      %p197 = scmp.ne.s32.totalorder %s188, %s189
      %p198 = scmp.eq.s32.totalorder %s26, 0
      %p199 = por %p197, %p198
      %p200 = scmp.ne.s32.totalorder %s188, %s189
      %p201 = scmp.eq.s32.totalorder %s27, 2
      %p202 = por %p200, %p201
      %p204 = scmp.ne.s32.totalorder %s189, %s203
      %p205 = scmp.eq.s32.totalorder %s27, 0
      %p206 = por %p204, %p205
      %s208 = sadd.s32 %s207, 1
      %p211 = scmp.eq.s32.totalorder %s21, 2
      %p212 = scmp.ne.s32.totalorder %s207, %s209
      %p213 = scmp.eq.s32.totalorder %s21, 0
      %p214 = por %p212, %p213
      %p215 = scmp.ne.s32.totalorder %s207, %s209
      %p216 = scmp.eq.s32.totalorder %s26, 2
      %p217 = por %p215, %p216
      %p218 = scmp.ne.s32.totalorder %s209, %s210
      %p219 = scmp.eq.s32.totalorder %s26, 0
      %p220 = por %p218, %p219
      %p221 = scmp.ne.s32.totalorder %s209, %s210
      %p222 = scmp.eq.s32.totalorder %s27, 2
      %p223 = por %p221, %p222
      %p225 = scmp.ne.s32.totalorder %s210, %s224
      %p226 = scmp.eq.s32.totalorder %s27, 0
      %p227 = por %p225, %p226
      %s229 = sadd.s32 %s228, 1
      %p232 = scmp.eq.s32.totalorder %s21, 2
      %p233 = scmp.ne.s32.totalorder %s228, %s230
      %p234 = scmp.eq.s32.totalorder %s21, 0
      %p235 = por %p233, %p234
      %p236 = scmp.ne.s32.totalorder %s228, %s230
      %p237 = scmp.eq.s32.totalorder %s26, 2
      %p238 = por %p236, %p237
      %p239 = scmp.ne.s32.totalorder %s230, %s231
      %p240 = scmp.eq.s32.totalorder %s26, 0
      %p241 = por %p239, %p240
      %p242 = scmp.ne.s32.totalorder %s230, %s231
      %p243 = scmp.eq.s32.totalorder %s27, 2
      %p244 = por %p242, %p243
      %p246 = scmp.ne.s32.totalorder %s231, %s245
      %p247 = scmp.eq.s32.totalorder %s27, 0
      %p248 = por %p246, %p247
      %s249 = ssub.s32 %s21, %s28
      %p250 = scmp.eq.s32.totalorder %s249, 0
      %s252 = sadd.s32 %s251, 1
      %s253 = scalar_select %p250, %s251, %s252
      %p256 = pneg %p250
      %p257 = scmp.eq.s32.totalorder %s21, 2
      %p258 = por %p256, %p257
      %p259 = scmp.ne.s32.totalorder %s251, %s254
      %p260 = scmp.eq.s32.totalorder %s21, 0
      %p261 = por %p259, %p260
      %p262 = scmp.ne.s32.totalorder %s251, %s254
      %p263 = scmp.eq.s32.totalorder %s26, 2
      %p264 = por %p262, %p263
      %p265 = scmp.ne.s32.totalorder %s254, %s255
      %p266 = scmp.eq.s32.totalorder %s26, 0
      %p267 = por %p265, %p266
      %p268 = scmp.ne.s32.totalorder %s254, %s255
      %p269 = scmp.eq.s32.totalorder %s27, 2
      %p270 = por %p268, %p269
      %p272 = scmp.ne.s32.totalorder %s255, %s271
      %p273 = scmp.eq.s32.totalorder %s27, 0
      %p274 = por %p272, %p273
      %s275 = ssub.s32 %s21, %s28
      %p276 = scmp.eq.s32.totalorder %s275, 0
      %s278 = sadd.s32 %s277, 1
      %s279 = scalar_select %p276, %s277, %s278
      %p282 = pneg %p276
      %p283 = scmp.eq.s32.totalorder %s21, 2
      %p284 = por %p282, %p283
      %p285 = scmp.ne.s32.totalorder %s277, %s280
      %p286 = scmp.eq.s32.totalorder %s21, 0
      %p287 = por %p285, %p286
      %p288 = scmp.ne.s32.totalorder %s277, %s280
      %p289 = scmp.eq.s32.totalorder %s26, 2
      %p290 = por %p288, %p289
      %p291 = scmp.ne.s32.totalorder %s280, %s281
      %p292 = scmp.eq.s32.totalorder %s26, 0
      %p293 = por %p291, %p292
      %p294 = scmp.ne.s32.totalorder %s280, %s281
      %p295 = scmp.eq.s32.totalorder %s27, 2
      %p296 = por %p294, %p295
      %p298 = scmp.ne.s32.totalorder %s281, %s297
      %p299 = scmp.eq.s32.totalorder %s27, 0
      %p300 = por %p298, %p299
      %p301 = scmp.le.s32.totalorder 1, %s21
      %p302 = scmp.lt.s32.totalorder %s21, 4
      %p303 = pnand %p301, %p302
      %p304 = pneg %p303
      // Predicated region
      $region9: #{tpu_custom_call.1} parent=5 // pred_check
        _
      $region10: #{tpu_custom_call.1} parent=5 // pred_check_branch
        %306 = sbr.rel (%p303) target = $region12
      $region11: #{tpu_custom_call.1} parent=5 // pred_region
        %s307 = ssub.s32 %s21, 1
        // Predicated region
        $region13: #{tpu_custom_call.1} parent=11 // pred_check
          %p308 = pneg %p94
        $region14: #{tpu_custom_call.1} parent=11 // pred_check_branch
          %310 = sbr.rel (%p308) target = $region16
        $region15: #{tpu_custom_call.1} parent=11 // pred_region
          _
        $region16: #{tpu_custom_call.1} parent=11 // pred_fallthru
          _
        // Predicated region
        $region17: #{tpu_custom_call.1} parent=11 // pred_check
          %p311 = pneg %p115
        $region18: #{tpu_custom_call.1} parent=11 // pred_check_branch
          %313 = sbr.rel (%p311) target = $region20
        $region19: #{tpu_custom_call.1} parent=11 // pred_region
          _
        $region20: #{tpu_custom_call.1} parent=11 // pred_fallthru
          _
        // Predicated region
        $region21: #{tpu_custom_call.1} parent=11 // pred_check
          %p314 = pneg %p136
        $region22: #{tpu_custom_call.1} parent=11 // pred_check_branch
          %316 = sbr.rel (%p314) target = $region24
        $region23: #{tpu_custom_call.1} parent=11 // pred_region
          _
        $region24: #{tpu_custom_call.1} parent=11 // pred_fallthru
          _
        // Predicated region
        $region25: #{tpu_custom_call.1} parent=11 // pred_check
          %p317 = pneg %p157
        $region26: #{tpu_custom_call.1} parent=11 // pred_check_branch
          %319 = sbr.rel (%p317) target = $region28
        $region27: #{tpu_custom_call.1} parent=11 // pred_region
          _
        $region28: #{tpu_custom_call.1} parent=11 // pred_fallthru
          _
        // Predicated region
        $region29: #{tpu_custom_call.1} parent=11 // pred_check
          %p320 = pneg %p178
        $region30: #{tpu_custom_call.1} parent=11 // pred_check_branch
          %322 = sbr.rel (%p320) target = $region32
        $region31: #{tpu_custom_call.1} parent=11 // pred_region
          _
        $region32: #{tpu_custom_call.1} parent=11 // pred_fallthru
          _
        // Predicated region
        $region33: #{tpu_custom_call.1} parent=11 // pred_check
          %p323 = pneg %p199
        $region34: #{tpu_custom_call.1} parent=11 // pred_check_branch
          %325 = sbr.rel (%p323) target = $region36
        $region35: #{tpu_custom_call.1} parent=11 // pred_region
          _
        $region36: #{tpu_custom_call.1} parent=11 // pred_fallthru
          _
        // Predicated region
        $region37: #{tpu_custom_call.1} parent=11 // pred_check
          %p326 = pneg %p220
        $region38: #{tpu_custom_call.1} parent=11 // pred_check_branch
          %328 = sbr.rel (%p326) target = $region40
        $region39: #{tpu_custom_call.1} parent=11 // pred_region
          _
        $region40: #{tpu_custom_call.1} parent=11 // pred_fallthru
          _
        // Predicated region
        $region41: #{tpu_custom_call.1} parent=11 // pred_check
          %p329 = pneg %p241
        $region42: #{tpu_custom_call.1} parent=11 // pred_check_branch
          %331 = sbr.rel (%p329) target = $region44
        $region43: #{tpu_custom_call.1} parent=11 // pred_region
          _
        $region44: #{tpu_custom_call.1} parent=11 // pred_fallthru
          _
      $region12: #{tpu_custom_call.1} parent=5 // pred_fallthru
        _
      %p332 = scmp.lt.s32.totalorder %s21, 3
      // Predicated region
      $region45: #{tpu_custom_call.1} parent=5 // pred_check
        %p333 = pneg %p332
      $region46: #{tpu_custom_call.1} parent=5 // pred_check_branch
        %335 = sbr.rel (%p333) target = $region48
      $region47: #{tpu_custom_call.1} parent=5 // pred_region
        // Predicated region
        $region49: #{tpu_custom_call.1} parent=47 // pred_check
          %p336 = pneg %p41
        $region50: #{tpu_custom_call.1} parent=47 // pred_check_branch
          %338 = sbr.rel (%p336) target = $region52
        $region51: #{tpu_custom_call.1} parent=47 // pred_region
          %s339 = smul.u32 4, %s21
          %s340 = ssub.s32 10, %s339
          %p341 = scmp.lt.s32.totalorder %s340, 4
          %s342 = scalar_select %p341, %s340, 4
          %s343 = smul.u32 128, %s342
          %p344 = scmp.lt.s32.totalorder %s339, 9
          %s345 = scalar_select %p344, %s339, 9
          %s346 = smul.addr %s345, 8
          %s347 = scalar_lea.vmem %s0, %s346
          %s348 = smul.u32 4, %s21
          %s349 = ssub.s32 10, %s348
          %p350 = scmp.lt.s32.totalorder %s349, 4
          %s351 = scalar_select %p350, %s349, 4
          %s352 = smul.u32 128, %s351
        $region52: #{tpu_custom_call.1} parent=47 // pred_fallthru
          _
        // Predicated region
        $region53: #{tpu_custom_call.1} parent=47 // pred_check
          %p353 = pneg %p67
        $region54: #{tpu_custom_call.1} parent=47 // pred_check_branch
          %355 = sbr.rel (%p353) target = $region56
        $region55: #{tpu_custom_call.1} parent=47 // pred_region
          %s356 = smul.u32 4, %s21
          %s357 = ssub.s32 10, %s356
          %p358 = scmp.lt.s32.totalorder %s357, 4
          %s359 = scalar_select %p358, %s357, 4
          %s360 = smul.u32 128, %s359
          %p361 = scmp.lt.s32.totalorder %s356, 9
          %s362 = scalar_select %p361, %s356, 9
          %s363 = smul.addr %s362, 8
          %s364 = scalar_lea.vmem %s1, %s363
          %s365 = smul.u32 4, %s21
          %s366 = ssub.s32 10, %s365
          %p367 = scmp.lt.s32.totalorder %s366, 4
          %s368 = scalar_select %p367, %s366, 4
          %s369 = smul.u32 128, %s368
        $region56: #{tpu_custom_call.1} parent=47 // pred_fallthru
          _
      $region48: #{tpu_custom_call.1} parent=5 // pred_fallthru
        _
      %p370 = scmp.le.s32.totalorder 1, %s21
      %p371 = scmp.lt.s32.totalorder %s21, 4
      %p372 = pnand %p370, %p371
      %p373 = pneg %p372
      // Predicated region
      $region57: #{tpu_custom_call.1} parent=5 // pred_check
        _
      $region58: #{tpu_custom_call.1} parent=5 // pred_check_branch
        %375 = sbr.rel (%p372) target = $region60
      $region59: #{tpu_custom_call.1} parent=5 // pred_region
        %s376 = ssub.s32 %s21, 1
        %s377 = smul.u32 4, %s26
        %s378 = ssub.s32 10, %s377
        %p379 = scmp.lt.s32.totalorder %s378, 4
        %s380 = scalar_select %p379, %s378, 4
        %s381 = smul.u32 128, %s380
        %p382 = scmp.lt.s32.totalorder %s377, 9
        %s383 = scalar_select %p382, %s377, 9
        %s384 = smul.addr %s383, 8
        %s385 = scalar_lea.vmem %s0, %s384
        %p386 = pneg %p47
        %p387 = pneg %p44
        %s388 = smul.u32 4, %s26
        %s389 = ssub.s32 10, %s388
        %p390 = scmp.lt.s32.totalorder %s389, 4
        %s391 = scalar_select %p390, %s389, 4
        %s392 = smul.u32 128, %s391
        %p393 = scmp.lt.s32.totalorder %s388, 9
        %s394 = scalar_select %p393, %s388, 9
        %s395 = smul.addr %s394, 8
        %s396 = scalar_lea.vmem %s1, %s395
        %p397 = pneg %p73
        %p398 = pneg %p70
        %p399 = pneg %p94
        %p400 = pneg %p91
        %p401 = pneg %p115
        %p402 = pneg %p112
        %p403 = pneg %p136
        %p404 = pneg %p133
        %p405 = pneg %p157
        %p406 = pneg %p154
        %p407 = pneg %p178
        %p408 = pneg %p175
        %p409 = pneg %p199
        %p410 = pneg %p196
        %p411 = pneg %p220
        %p412 = pneg %p217
        %p413 = pneg %p241
        %p414 = pneg %p238
        %p415 = pneg %p267
        %p416 = pneg %p264
        %s417 = sand.u32 %s254, 1
        %s418 = scalar_lea.sflag [#allocation3], %s417
        %s419 = sand.u32 %s254, 1
        %s420 = smul.addr %s419, 32
        %s421 = scalar_lea.vmem [#allocation2], %s420
        %p422 = pneg %p293
        %p423 = pneg %p290
        %s424 = smul.u32 4, %s26
        %p425 = scmp.lt.s32.totalorder %s424, 11
        %s426 = scalar_select %p425, %s424, 11
        %s427 = smul.addr %s426, 8
        %s428 = scalar_lea.vmem %s11, %s427
        %s429 = smul.u32 4, %s26
        %s430 = ssub.s32 10, %s429
        %p431 = scmp.lt.s32.totalorder %s430, 4
        %s432 = scalar_select %p431, %s430, 4
        %s433 = smul.u32 128, %s432
        %p434 = scmp.lt.s32.totalorder %s429, 9
        %s435 = scalar_select %p434, %s429, 9
        %s436 = smul.addr %s435, 8
        %s437 = scalar_lea.vmem %s0, %s436
        %s438 = smul.u32 4, %s26
        %s439 = ssub.s32 10, %s438
        %p440 = scmp.lt.s32.totalorder %s439, 4
        %s441 = scalar_select %p440, %s439, 4
        %s442 = smul.u32 128, %s441
        %s443 = smul.u32 4, %s26
        %s444 = ssub.s32 10, %s443
        %p445 = scmp.lt.s32.totalorder %s444, 4
        %s446 = scalar_select %p445, %s444, 4
        %s447 = smul.u32 128, %s446
        %p448 = scmp.lt.s32.totalorder %s443, 9
        %s449 = scalar_select %p448, %s443, 9
        %s450 = smul.addr %s449, 8
        %s451 = scalar_lea.vmem %s1, %s450
        %s452 = smul.u32 4, %s26
        %s453 = ssub.s32 10, %s452
        %p454 = scmp.lt.s32.totalorder %s453, 4
        %s455 = scalar_select %p454, %s453, 4
        %s456 = smul.u32 128, %s455
        %s457 = smul.u32 4, %s26
        %s458 = smul.u32 4, %s26
        %p459 = scmp.lt.s32.totalorder %s458, 11
        %s460 = scalar_select %p459, %s458, 11
        %s461 = smul.addr %s460, 8
        %s462 = scalar_lea.vmem %s11, %s461
        %s463 = smul.u32 4, %s26
        %v464 = vld [vmem:[%s437] sm:$0xff]
        %v465 = vld [vmem:[%s437 + $0x8] sm:$0xff]
        %v466 = vld [vmem:[%s437 + $0x10] sm:$0xff]
        %v467 = vld [vmem:[%s437 + $0x18] sm:$0xff]
        %v468 = vld [vmem:[%s2] sm:$0xff]
        %v469 = vld [vmem:[%s2 + $0x8] sm:$0xff]
        %v470 = vld [vmem:[%s2 + $0x10] sm:$0xff]
        %v471 = vld [vmem:[%s2 + $0x18] sm:$0xff]
        %v472 = vld [vmem:[%s2 + $0x20] sm:$0xff]
        %v473 = vld [vmem:[%s2 + $0x28] sm:$0xff]
        %v474 = vld [vmem:[%s2 + $0x30] sm:$0xff]
        %v475 = vld [vmem:[%s2 + $0x38] sm:$0xff]
        %v476 = vld [vmem:[%s2 + $0x40] sm:$0xff]
        %v477 = vld [vmem:[%s2 + $0x48] sm:$0xff]
        %v478 = vld [vmem:[%s2 + $0x50] sm:$0xff]
        %v479 = vld [vmem:[%s2 + $0x58] sm:$0xff]
        %v480 = vld [vmem:[%s2 + $0x60] sm:$0xff]
        %v481 = vld [vmem:[%s2 + $0x68] sm:$0xff]
        %v482 = vld [vmem:[%s2 + $0x70] sm:$0xff]
        %v483 = vld [vmem:[%s2 + $0x78] sm:$0xff]
        %v484 = vld [vmem:[%s3] sm:$0x1]
        %v486 = vlaneseq
        %v487 = vshrl.u32 %v486, 7
        %v488 = vsub.s32 0, %v487
        %v489 = vrot.slane %v484, %v488
        %491 = vmatprep.subr.mxu0 0.0
        %492 = vmatpush1.msra.mxu0 %v483
        %493 = vmatprep.subr.mxu0 0.0
        %494 = vmatpush1.msra.mxu0 %v482
        %495 = vmatprep.subr.mxu0 0.0
        %496 = vmatpush1.msra.mxu0 %v481
        %497 = vmatprep.subr.mxu0 0.0
        %498 = vmatpush1.msra.mxu0 %v480
        %499 = vmatprep.subr.mxu0 0.0
        %500 = vmatpush1.msra.mxu0 %v479
        %501 = vmatprep.subr.mxu0 0.0
        %502 = vmatpush1.msra.mxu0 %v478
        %503 = vmatprep.subr.mxu0 0.0
        %504 = vmatpush1.msra.mxu0 %v477
        %505 = vmatprep.subr.mxu0 0.0
        %506 = vmatpush1.msra.mxu0 %v476
        %507 = vmatprep.subr.mxu0 0.0
        %508 = vmatpush1.msra.mxu0 %v475
        %509 = vmatprep.subr.mxu0 0.0
        %510 = vmatpush1.msra.mxu0 %v474
        %511 = vmatprep.subr.mxu0 0.0
        %512 = vmatpush1.msra.mxu0 %v473
        %513 = vmatprep.subr.mxu0 0.0
        %514 = vmatpush1.msra.mxu0 %v472
        %515 = vmatprep.subr.mxu0 0.0
        %516 = vmatpush1.msra.mxu0 %v471
        %517 = vmatprep.subr.mxu0 0.0
        %518 = vmatpush1.msra.mxu0 %v470
        %519 = vmatprep.subr.mxu0 0.0
        %520 = vmatpush1.msra.mxu0 %v469
        %521 = vmatprep.subr.mxu0 0.0
        %522 = vmatpush1.msra.mxu0 %v468
        %523 = vmatprep.subr.mxu0 0.0
        %524 = vmatpush2.msra.mxu0 0.0
        %525 = vmatprep.subr.mxu0 0.0
        %526 = vmatpush2.msra.mxu0 0.0
        %527 = vmatprep.subr.mxu0 0.0
        %528 = vmatpush2.msra.mxu0 0.0
        %529 = vmatprep.subr.mxu0 0.0
        %530 = vmatpush2.msra.mxu0 0.0
        %531 = vmatprep.subr.mxu0 0.0
        %532 = vmatpush2.msra.mxu0 0.0
        %533 = vmatprep.subr.mxu0 0.0
        %534 = vmatpush2.msra.mxu0 0.0
        %535 = vmatprep.subr.mxu0 0.0
        %536 = vmatpush2.msra.mxu0 0.0
        %537 = vmatprep.subr.mxu0 0.0
        %538 = vmatpush2.msra.mxu0 0.0
        %539 = vmatprep.subr.mxu0 0.0
        %540 = vmatpush2.msra.mxu0 0.0
        %541 = vmatprep.subr.mxu0 0.0
        %542 = vmatpush2.msra.mxu0 0.0
        %543 = vmatprep.subr.mxu0 0.0
        %544 = vmatpush2.msra.mxu0 0.0
        %545 = vmatprep.subr.mxu0 0.0
        %546 = vmatpush2.msra.mxu0 0.0
        %547 = vmatprep.subr.mxu0 0.0
        %548 = vmatpush2.msra.mxu0 0.0
        %549 = vmatprep.subr.mxu0 0.0
        %550 = vmatpush2.msra.mxu0 0.0
        %551 = vmatprep.subr.mxu0 0.0
        %552 = vmatpush2.msra.mxu0 0.0
        %553 = vmatprep.subr.mxu0 0.0
        %554 = vmatpush2.msra.mxu0 0.0
        %555 = vmatprep.mubr.f32.mxu0 0.0
        %556 = vmatmul.mubr.f32.gmra.mxu0 %v464
        %v557 = vpop.f32.mrf.mxu0
        %v558 = vadd.f32 %v489, %v557
        %v559 = vpop.f32.mrf.mxu0
        %560 = vmatprep.mubr.f32.mxu0 0.0
        %561 = vmatmul.mubr.f32.gmra.mxu0 %v465
        %v562 = vpop.f32.mrf.mxu0
        %v563 = vadd.f32 %v489, %v562
        %v564 = vpop.f32.mrf.mxu0
        %565 = vmatprep.mubr.f32.mxu0 0.0
        %566 = vmatmul.mubr.f32.gmra.mxu0 %v466
        %v567 = vpop.f32.mrf.mxu0
        %v568 = vadd.f32 %v489, %v567
        %v569 = vpop.f32.mrf.mxu0
        %570 = vmatprep.mubr.f32.mxu0 0.0
        %571 = vmatmul.mubr.f32.gmra.mxu0 %v467
        %v572 = vpop.f32.mrf.mxu0
        %v573 = vadd.f32 %v489, %v572
        %v574 = vpop.f32.mrf.mxu0
        %575 = vdwg.mxu0
        %v576 = vmax.f32 %v558, 0.0
        %v577 = vmax.f32 %v563, 0.0
        %v578 = vmax.f32 %v568, 0.0
        %v579 = vmax.f32 %v573, 0.0
        %v580 = vld [vmem:[%s4] sm:$0xff]
        %v581 = vld [vmem:[%s4 + $0x8] sm:$0xff]
        %v582 = vld [vmem:[%s4 + $0x10] sm:$0xff]
        %v583 = vld [vmem:[%s4 + $0x18] sm:$0xff]
        %v584 = vld [vmem:[%s4 + $0x20] sm:$0xff]
        %v585 = vld [vmem:[%s4 + $0x28] sm:$0xff]
        %v586 = vld [vmem:[%s4 + $0x30] sm:$0xff]
        %v587 = vld [vmem:[%s4 + $0x38] sm:$0xff]
        %v588 = vld [vmem:[%s5] sm:$0x1]
        %v590 = vlaneseq
        %v591 = vshrl.u32 %v590, 7
        %v592 = vsub.s32 0, %v591
        %v593 = vrot.slane %v588, %v592
        %vm595 = vcmask 523264
        %v597 = vsel %vm595, %v576, 0
        %v600 = vsel %vm595, %v577, 0
        %v603 = vsel %vm595, %v578, 0
        %v606 = vsel %vm595, %v579, 0
        %608 = vmatprep.subr.mxu0 0.0
        %609 = vmatpush1.msra.mxu0 0.0
        %610 = vmatprep.subr.mxu0 0.0
        %611 = vmatpush1.msra.mxu0 0.0
        %612 = vmatprep.subr.mxu0 0.0
        %613 = vmatpush1.msra.mxu0 0.0
        %614 = vmatprep.subr.mxu0 0.0
        %615 = vmatpush1.msra.mxu0 0.0
        %616 = vmatprep.subr.mxu0 0.0
        %617 = vmatpush1.msra.mxu0 0.0
        %618 = vmatprep.subr.mxu0 0.0
        %619 = vmatpush1.msra.mxu0 0.0
        %620 = vmatprep.subr.mxu0 0.0
        %621 = vmatpush1.msra.mxu0 0.0
        %622 = vmatprep.subr.mxu0 0.0
        %623 = vmatpush1.msra.mxu0 0.0
        %624 = vmatprep.subr.mxu0 0.0
        %625 = vmatpush1.msra.mxu0 %v587
        %626 = vmatprep.subr.mxu0 0.0
        %627 = vmatpush1.msra.mxu0 %v586
        %628 = vmatprep.subr.mxu0 0.0
        %629 = vmatpush1.msra.mxu0 %v585
        %630 = vmatprep.subr.mxu0 0.0
        %631 = vmatpush1.msra.mxu0 %v584
        %632 = vmatprep.subr.mxu0 0.0
        %633 = vmatpush1.msra.mxu0 %v583
        %634 = vmatprep.subr.mxu0 0.0
        %635 = vmatpush1.msra.mxu0 %v582
        %636 = vmatprep.subr.mxu0 0.0
        %637 = vmatpush1.msra.mxu0 %v581
        %638 = vmatprep.subr.mxu0 0.0
        %639 = vmatpush1.msra.mxu0 %v580
        %640 = vmatprep.subr.mxu0 0.0
        %641 = vmatpush2.msra.mxu0 0.0
        %642 = vmatprep.subr.mxu0 0.0
        %643 = vmatpush2.msra.mxu0 0.0
        %644 = vmatprep.subr.mxu0 0.0
        %645 = vmatpush2.msra.mxu0 0.0
        %646 = vmatprep.subr.mxu0 0.0
        %647 = vmatpush2.msra.mxu0 0.0
        %648 = vmatprep.subr.mxu0 0.0
        %649 = vmatpush2.msra.mxu0 0.0
        %650 = vmatprep.subr.mxu0 0.0
        %651 = vmatpush2.msra.mxu0 0.0
        %652 = vmatprep.subr.mxu0 0.0
        %653 = vmatpush2.msra.mxu0 0.0
        %654 = vmatprep.subr.mxu0 0.0
        %655 = vmatpush2.msra.mxu0 0.0
        %656 = vmatprep.subr.mxu0 0.0
        %657 = vmatpush2.msra.mxu0 0.0
        %658 = vmatprep.subr.mxu0 0.0
        %659 = vmatpush2.msra.mxu0 0.0
        %660 = vmatprep.subr.mxu0 0.0
        %661 = vmatpush2.msra.mxu0 0.0
        %662 = vmatprep.subr.mxu0 0.0
        %663 = vmatpush2.msra.mxu0 0.0
        %664 = vmatprep.subr.mxu0 0.0
        %665 = vmatpush2.msra.mxu0 0.0
        %666 = vmatprep.subr.mxu0 0.0
        %667 = vmatpush2.msra.mxu0 0.0
        %668 = vmatprep.subr.mxu0 0.0
        %669 = vmatpush2.msra.mxu0 0.0
        %670 = vmatprep.subr.mxu0 0.0
        %671 = vmatpush2.msra.mxu0 0.0
        %672 = vmatprep.mubr.f32.mxu0 0.0
        %673 = vmatmul.mubr.f32.gmra.mxu0 %v597
        %v674 = vpop.f32.mrf.mxu0
        %v675 = vadd.f32 %v593, %v674
        %v676 = vpop.f32.mrf.mxu0
        %677 = vmatprep.mubr.f32.mxu0 0.0
        %678 = vmatmul.mubr.f32.gmra.mxu0 %v600
        %v679 = vpop.f32.mrf.mxu0
        %v680 = vadd.f32 %v593, %v679
        %v681 = vpop.f32.mrf.mxu0
        %682 = vmatprep.mubr.f32.mxu0 0.0
        %683 = vmatmul.mubr.f32.gmra.mxu0 %v603
        %v684 = vpop.f32.mrf.mxu0
        %v685 = vadd.f32 %v593, %v684
        %v686 = vpop.f32.mrf.mxu0
        %687 = vmatprep.mubr.f32.mxu0 0.0
        %688 = vmatmul.mubr.f32.gmra.mxu0 %v606
        %v689 = vpop.f32.mrf.mxu0
        %v690 = vadd.f32 %v593, %v689
        %v691 = vpop.f32.mrf.mxu0
        %692 = vdwg.mxu0
        %v693 = vld [vmem:[%s451] sm:$0xff]
        %v694 = vld [vmem:[%s451 + $0x8] sm:$0xff]
        %v695 = vld [vmem:[%s451 + $0x10] sm:$0xff]
        %v696 = vld [vmem:[%s451 + $0x18] sm:$0xff]
        %v697 = vmul.f32 %v675, 0.5
        %v698 = vmul.f32 %v680, 0.5
        %v699 = vmul.f32 %v685, 0.5
        %v700 = vmul.f32 %v690, 0.5
        %v701 = vmul.f32 %v697, 1.442695
        %v702 = vpow.pop %v701
        %v703 = vmul.f32 %v698, 1.442695
        %v704 = vpow.pop %v703
        %v705 = vmul.f32 %v699, 1.442695
        %v706 = vpow.pop %v705
        %v707 = vmul.f32 %v700, 1.442695
        %v708 = vpow.pop %v707
        %v709 = vmul.f32 %v693, %v702
        %v710 = vmul.f32 %v694, %v704
        %v711 = vmul.f32 %v695, %v706
        %v712 = vmul.f32 %v696, %v708
        %v713 = vadd.f32 %v675, %v709
        %v714 = vadd.f32 %v680, %v710
        %v715 = vadd.f32 %v685, %v711
        %v716 = vadd.f32 %v690, %v712
        %v717 = vld [vmem:[%s6] sm:$0xff]
        %v718 = vld [vmem:[%s6 + $0x8] sm:$0xff]
        %v719 = vld [vmem:[%s6 + $0x10] sm:$0xff]
        %v720 = vld [vmem:[%s6 + $0x18] sm:$0xff]
        %v721 = vld [vmem:[%s7] sm:$0x1]
        %v723 = vlaneseq
        %v724 = vshrl.u32 %v723, 7
        %v725 = vsub.s32 0, %v724
        %v726 = vrot.slane %v721, %v725
        %vm728 = vcmask 261120
        %v730 = vsel %vm728, %v713, 0
        %v733 = vsel %vm728, %v714, 0
        %v736 = vsel %vm728, %v715, 0
        %v739 = vsel %vm728, %v716, 0
        %741 = vmatprep.subr.mxu0 0.0
        %742 = vmatpush1.msra.mxu0 0.0
        %743 = vmatprep.subr.mxu0 0.0
        %744 = vmatpush1.msra.mxu0 0.0
        %745 = vmatprep.subr.mxu0 0.0
        %746 = vmatpush1.msra.mxu0 0.0
        %747 = vmatprep.subr.mxu0 0.0
        %748 = vmatpush1.msra.mxu0 0.0
        %749 = vmatprep.subr.mxu0 0.0
        %750 = vmatpush1.msra.mxu0 0.0
        %751 = vmatprep.subr.mxu0 0.0
        %752 = vmatpush1.msra.mxu0 0.0
        %753 = vmatprep.subr.mxu0 0.0
        %754 = vmatpush1.msra.mxu0 0.0
        %755 = vmatprep.subr.mxu0 0.0
        %756 = vmatpush1.msra.mxu0 0.0
        %757 = vmatprep.subr.mxu0 0.0
        %758 = vmatpush1.msra.mxu0 0.0
        %759 = vmatprep.subr.mxu0 0.0
        %760 = vmatpush1.msra.mxu0 0.0
        %761 = vmatprep.subr.mxu0 0.0
        %762 = vmatpush1.msra.mxu0 0.0
        %763 = vmatprep.subr.mxu0 0.0
        %764 = vmatpush1.msra.mxu0 0.0
        %765 = vmatprep.subr.mxu0 0.0
        %766 = vmatpush1.msra.mxu0 %v720
        %767 = vmatprep.subr.mxu0 0.0
        %768 = vmatpush1.msra.mxu0 %v719
        %769 = vmatprep.subr.mxu0 0.0
        %770 = vmatpush1.msra.mxu0 %v718
        %771 = vmatprep.subr.mxu0 0.0
        %772 = vmatpush1.msra.mxu0 %v717
        %773 = vmatprep.subr.mxu0 0.0
        %774 = vmatpush2.msra.mxu0 0.0
        %775 = vmatprep.subr.mxu0 0.0
        %776 = vmatpush2.msra.mxu0 0.0
        %777 = vmatprep.subr.mxu0 0.0
        %778 = vmatpush2.msra.mxu0 0.0
        %779 = vmatprep.subr.mxu0 0.0
        %780 = vmatpush2.msra.mxu0 0.0
        %781 = vmatprep.subr.mxu0 0.0
        %782 = vmatpush2.msra.mxu0 0.0
        %783 = vmatprep.subr.mxu0 0.0
        %784 = vmatpush2.msra.mxu0 0.0
        %785 = vmatprep.subr.mxu0 0.0
        %786 = vmatpush2.msra.mxu0 0.0
        %787 = vmatprep.subr.mxu0 0.0
        %788 = vmatpush2.msra.mxu0 0.0
        %789 = vmatprep.subr.mxu0 0.0
        %790 = vmatpush2.msra.mxu0 0.0
        %791 = vmatprep.subr.mxu0 0.0
        %792 = vmatpush2.msra.mxu0 0.0
        %793 = vmatprep.subr.mxu0 0.0
        %794 = vmatpush2.msra.mxu0 0.0
        %795 = vmatprep.subr.mxu0 0.0
        %796 = vmatpush2.msra.mxu0 0.0
        %797 = vmatprep.subr.mxu0 0.0
        %798 = vmatpush2.msra.mxu0 0.0
        %799 = vmatprep.subr.mxu0 0.0
        %800 = vmatpush2.msra.mxu0 0.0
        %801 = vmatprep.subr.mxu0 0.0
        %802 = vmatpush2.msra.mxu0 0.0
        %803 = vmatprep.subr.mxu0 0.0
        %804 = vmatpush2.msra.mxu0 0.0
        %805 = vmatprep.mubr.f32.mxu0 0.0
        %806 = vmatmul.mubr.f32.gmra.mxu0 %v730
        %v807 = vpop.f32.mrf.mxu0
        %v808 = vadd.f32 %v726, %v807
        %v809 = vpop.f32.mrf.mxu0
        %810 = vmatprep.mubr.f32.mxu0 0.0
        %811 = vmatmul.mubr.f32.gmra.mxu0 %v733
        %v812 = vpop.f32.mrf.mxu0
        %v813 = vadd.f32 %v726, %v812
        %v814 = vpop.f32.mrf.mxu0
        %815 = vmatprep.mubr.f32.mxu0 0.0
        %816 = vmatmul.mubr.f32.gmra.mxu0 %v736
        %v817 = vpop.f32.mrf.mxu0
        %v818 = vadd.f32 %v726, %v817
        %v819 = vpop.f32.mrf.mxu0
        %820 = vmatprep.mubr.f32.mxu0 0.0
        %821 = vmatmul.mubr.f32.gmra.mxu0 %v739
        %v822 = vpop.f32.mrf.mxu0
        %v823 = vadd.f32 %v726, %v822
        %v824 = vpop.f32.mrf.mxu0
        %825 = vdwg.mxu0
        %v826 = vmax.f32 %v808, 0.0
        %v827 = vmax.f32 %v813, 0.0
        %v828 = vmax.f32 %v818, 0.0
        %v829 = vmax.f32 %v823, 0.0
        %v830 = vld [vmem:[%s8] sm:$0xff]
        %v831 = vld [vmem:[%s8 + $0x8] sm:$0xff]
        %v832 = vld [vmem:[%s8 + $0x10] sm:$0xff]
        %v833 = vld [vmem:[%s8 + $0x18] sm:$0xff]
        %v834 = vld [vmem:[%s8 + $0x20] sm:$0xff]
        %v835 = vld [vmem:[%s8 + $0x28] sm:$0xff]
        %v836 = vld [vmem:[%s8 + $0x30] sm:$0xff]
        %v837 = vld [vmem:[%s8 + $0x38] sm:$0xff]
        %v838 = vld [vmem:[%s9] sm:$0x1]
        %v840 = vlaneseq
        %v841 = vshrl.u32 %v840, 7
        %v842 = vsub.s32 0, %v841
        %v843 = vrot.slane %v838, %v842
        %v846 = vsel %vm595, %v826, 0
        %v849 = vsel %vm595, %v827, 0
        %v852 = vsel %vm595, %v828, 0
        %v855 = vsel %vm595, %v829, 0
        %857 = vmatprep.subr.mxu0 0.0
        %858 = vmatpush1.msra.mxu0 0.0
        %859 = vmatprep.subr.mxu0 0.0
        %860 = vmatpush1.msra.mxu0 0.0
        %861 = vmatprep.subr.mxu0 0.0
        %862 = vmatpush1.msra.mxu0 0.0
        %863 = vmatprep.subr.mxu0 0.0
        %864 = vmatpush1.msra.mxu0 0.0
        %865 = vmatprep.subr.mxu0 0.0
        %866 = vmatpush1.msra.mxu0 0.0
        %867 = vmatprep.subr.mxu0 0.0
        %868 = vmatpush1.msra.mxu0 0.0
        %869 = vmatprep.subr.mxu0 0.0
        %870 = vmatpush1.msra.mxu0 0.0
        %871 = vmatprep.subr.mxu0 0.0
        %872 = vmatpush1.msra.mxu0 0.0
        %873 = vmatprep.subr.mxu0 0.0
        %874 = vmatpush1.msra.mxu0 %v837
        %875 = vmatprep.subr.mxu0 0.0
        %876 = vmatpush1.msra.mxu0 %v836
        %877 = vmatprep.subr.mxu0 0.0
        %878 = vmatpush1.msra.mxu0 %v835
        %879 = vmatprep.subr.mxu0 0.0
        %880 = vmatpush1.msra.mxu0 %v834
        %881 = vmatprep.subr.mxu0 0.0
        %882 = vmatpush1.msra.mxu0 %v833
        %883 = vmatprep.subr.mxu0 0.0
        %884 = vmatpush1.msra.mxu0 %v832
        %885 = vmatprep.subr.mxu0 0.0
        %886 = vmatpush1.msra.mxu0 %v831
        %887 = vmatprep.subr.mxu0 0.0
        %888 = vmatpush1.msra.mxu0 %v830
        %889 = vmatprep.subr.mxu0 0.0
        %890 = vmatpush2.msra.mxu0 0.0
        %891 = vmatprep.subr.mxu0 0.0
        %892 = vmatpush2.msra.mxu0 0.0
        %893 = vmatprep.subr.mxu0 0.0
        %894 = vmatpush2.msra.mxu0 0.0
        %895 = vmatprep.subr.mxu0 0.0
        %896 = vmatpush2.msra.mxu0 0.0
        %897 = vmatprep.subr.mxu0 0.0
        %898 = vmatpush2.msra.mxu0 0.0
        %899 = vmatprep.subr.mxu0 0.0
        %900 = vmatpush2.msra.mxu0 0.0
        %901 = vmatprep.subr.mxu0 0.0
        %902 = vmatpush2.msra.mxu0 0.0
        %903 = vmatprep.subr.mxu0 0.0
        %904 = vmatpush2.msra.mxu0 0.0
        %905 = vmatprep.subr.mxu0 0.0
        %906 = vmatpush2.msra.mxu0 0.0
        %907 = vmatprep.subr.mxu0 0.0
        %908 = vmatpush2.msra.mxu0 0.0
        %909 = vmatprep.subr.mxu0 0.0
        %910 = vmatpush2.msra.mxu0 0.0
        %911 = vmatprep.subr.mxu0 0.0
        %912 = vmatpush2.msra.mxu0 0.0
        %913 = vmatprep.subr.mxu0 0.0
        %914 = vmatpush2.msra.mxu0 0.0
        %915 = vmatprep.subr.mxu0 0.0
        %916 = vmatpush2.msra.mxu0 0.0
        %917 = vmatprep.subr.mxu0 0.0
        %918 = vmatpush2.msra.mxu0 0.0
        %919 = vmatprep.subr.mxu0 0.0
        %920 = vmatpush2.msra.mxu0 0.0
        %921 = vmatprep.mubr.f32.mxu0 0.0
        %922 = vmatmul.mubr.f32.gmra.mxu0 %v846
        %v923 = vpop.f32.mrf.mxu0
        %v924 = vadd.f32 %v843, %v923
        %v925 = vpop.f32.mrf.mxu0
        %926 = vmatprep.mubr.f32.mxu0 0.0
        %927 = vmatmul.mubr.f32.gmra.mxu0 %v849
        %v928 = vpop.f32.mrf.mxu0
        %v929 = vadd.f32 %v843, %v928
        %v930 = vpop.f32.mrf.mxu0
        %931 = vmatprep.mubr.f32.mxu0 0.0
        %932 = vmatmul.mubr.f32.gmra.mxu0 %v852
        %v933 = vpop.f32.mrf.mxu0
        %v934 = vadd.f32 %v843, %v933
        %v935 = vpop.f32.mrf.mxu0
        %936 = vmatprep.mubr.f32.mxu0 0.0
        %937 = vmatmul.mubr.f32.gmra.mxu0 %v855
        %v938 = vpop.f32.mrf.mxu0
        %v939 = vadd.f32 %v843, %v938
        %v940 = vpop.f32.mrf.mxu0
        %941 = vdwg.mxu0
        %v942 = vxor.u32 %v924, 2147483648
        %v943 = vxor.u32 %v929, 2147483648
        %v944 = vxor.u32 %v934, 2147483648
        %v945 = vxor.u32 %v939, 2147483648
        %v946 = vmul.f32 %v942, 1.442695
        %v947 = vpow.pop %v946
        %v948 = vmul.f32 %v943, 1.442695
        %v949 = vpow.pop %v948
        %v950 = vmul.f32 %v944, 1.442695
        %v951 = vpow.pop %v950
        %v952 = vmul.f32 %v945, 1.442695
        %v953 = vpow.pop %v952
        %v954 = vadd.f32 %v947, 1.0
        %v955 = vadd.f32 %v949, 1.0
        %v956 = vadd.f32 %v951, 1.0
        %v957 = vadd.f32 %v953, 1.0
        %v958 = vrcp.pop %v954
        %v959 = vmul.f32 1.0, %v958
        %v960 = vrcp.pop %v955
        %v961 = vmul.f32 1.0, %v960
        %v962 = vrcp.pop %v956
        %v963 = vmul.f32 1.0, %v962
        %v964 = vrcp.pop %v957
        %v965 = vmul.f32 1.0, %v964
        %966 = vst [vmem:[%s421] sm:$0xff] %v959
        %967 = vst [vmem:[%s421 + $0x8] sm:$0xff] %v961
        %968 = vst [vmem:[%s421 + $0x10] sm:$0xff] %v963
        %969 = vst [vmem:[%s421 + $0x18] sm:$0xff] %v965
        %970 = vst.msk [vmem:[%s462] sm:$0xff] %vm728, %v675
        %971 = vst.msk [vmem:[%s462 + $0x8] sm:$0xff] %vm728, %v680
        %972 = vst.msk [vmem:[%s462 + $0x10] sm:$0xff] %vm728, %v685
        %973 = vst.msk [vmem:[%s462 + $0x18] sm:$0xff] %vm728, %v690
        %s974 = sand.u32 %s254, 1
        %s975 = scalar_lea.sflag [#allocation3], %s974
        %s976 = sand.u32 %s254, 1
        %s977 = smul.addr %s976, 32
        %s978 = scalar_lea.vmem [#allocation2], %s977
        %s979 = smul.u32 4, %s26
        %p980 = scmp.lt.s32.totalorder %s979, 11
        %s981 = scalar_select %p980, %s979, 11
        %s982 = smul.addr %s981, 8
        %s983 = scalar_lea.vmem %s11, %s982
        // Predicated region
        $region61: #{tpu_custom_call.1} parent=59 // pred_check
          %p984 = pneg %p264
        $region62: #{tpu_custom_call.1} parent=59 // pred_check_branch
          %986 = sbr.rel (%p984) target = $region64
        $region63: #{tpu_custom_call.1} parent=59 // pred_region
          %s987 = smul.u32 4, %s26
          %s989 = ssub.s32 512, 512
          %990 = vsyncadd %s975, %s989
          %s991 = smul.addr %s987, 128
          %s992 = scalar_lea.hbm %s10, %s991
          %s993 = sshll.u32 %s978, 4
          %s994 = int_to_ptr.vmem [resolvable:$true] %s993
          %999 = dma.vmem_to_hbm [thread:$0]  %s994, 512, %s992, %s975, 128, 128, 8
        $region64: #{tpu_custom_call.1} parent=59 // pred_fallthru
          _
        // Predicated region
        $region65: #{tpu_custom_call.1} parent=59 // pred_check
          %p1000 = pneg %p290
        $region66: #{tpu_custom_call.1} parent=59 // pred_check_branch
          %1002 = sbr.rel (%p1000) target = $region68
        $region67: #{tpu_custom_call.1} parent=59 // pred_region
          %s1003 = smul.u32 4, %s26
        $region68: #{tpu_custom_call.1} parent=59 // pred_fallthru
          _
      $region60: #{tpu_custom_call.1} parent=5 // pred_fallthru
        _
      %p1004 = scmp.le.s32.totalorder 2, %s21
      // Predicated region
      $region69: #{tpu_custom_call.1} parent=5 // pred_check
        %p1005 = pneg %p1004
      $region70: #{tpu_custom_call.1} parent=5 // pred_check_branch
        %1007 = sbr.rel (%p1005) target = $region72
      $region71: #{tpu_custom_call.1} parent=5 // pred_region
        %s1008 = ssub.s32 %s21, 2
        // Predicated region
        $region73: #{tpu_custom_call.1} parent=71 // pred_check
          %p1009 = pneg %p270
        $region74: #{tpu_custom_call.1} parent=71 // pred_check_branch
          %1011 = sbr.rel (%p1009) target = $region76
        $region75: #{tpu_custom_call.1} parent=71 // pred_region
          %s1012 = sand.u32 %s255, 1
          %s1013 = scalar_lea.sflag [#allocation3], %s1012
          %s1014 = sand.u32 %s255, 1
          %s1015 = smul.addr %s1014, 32
          %s1016 = scalar_lea.vmem [#allocation2], %s1015
          %1017 = dma.done %s1013, 512
        $region76: #{tpu_custom_call.1} parent=71 // pred_fallthru
          _
        // Predicated region
        $region77: #{tpu_custom_call.1} parent=71 // pred_check
          %p1018 = pneg %p296
        $region78: #{tpu_custom_call.1} parent=71 // pred_check_branch
          %1020 = sbr.rel (%p1018) target = $region80
        $region79: #{tpu_custom_call.1} parent=71 // pred_region
          %s1021 = smul.u32 4, %s27
          %p1022 = scmp.lt.s32.totalorder %s1021, 11
          %s1023 = scalar_select %p1022, %s1021, 11
          %s1024 = smul.addr %s1023, 8
          %s1025 = scalar_lea.vmem %s11, %s1024
        $region80: #{tpu_custom_call.1} parent=71 // pred_fallthru
          _
      $region72: #{tpu_custom_call.1} parent=5 // pred_fallthru
        _
    $region6: #{tpu_custom_call.1} parent=1 // loop_footer
      %s25 = sadd.s32 1, %s21
    $region7: #{tpu_custom_call.1} parent=1 // loop_footer_branch
      %20 = sbr.rel target = $region3
    $region8: #{tpu_custom_call.1} parent=1 // loop_exit
      _
    %1026 = vsyncpa [#allocation3], 1
    %s1027 = scalar_lea.sflag [#allocation3], 1
    %1028 = vsyncpa %s1027, 1

</llo_original>
